<compile_context>
chip_gen: v6e
topology: v6e:2x2x1
jax: 0.10.0
libtpu: 0.0.40
codegen_flags: <defaults>
</compile_context>

<pallas_src>
import math

import jax
import jax.numpy as jnp
from jax import lax
from jax.experimental import pallas as pl
from jax.experimental.pallas import tpu as pltpu


def _gelu_exact(x):
    # PyTorch F.gelu default (approximate='none'): 0.5 * x * (1 + erf(x / sqrt(2)))
    return 0.5 * x * (1.0 + lax.erf(x * (1.0 / math.sqrt(2.0))))


def _gelu_tanh(x):
    # tanh approximation (goes to the EUP slot).  Off by default: exact erf matches PyTorch.
    c = math.sqrt(2.0 / math.pi)
    return 0.5 * x * (1.0 + jnp.tanh(c * (x + 0.044715 * x * x * x)))


def _make_decoder_kernel(*, use_matmul_final, approximate_gelu):
    gelu = _gelu_tanh if approximate_gelu else _gelu_exact

    def kernel(x_ref, w0_ref, b0_ref, w1_ref, b1_ref, w2_ref, b2_ref,
               wf_ref, bf_ref, out_ref):
        cdt = w0_ref.dtype  # MXU compute dtype (bf16 or f32)

        # Layer 0: fused [r|z|tx] @ [w0_r; w0_z; wp@w0_t] + (bp@w0_t + b0) -> ONE matmul.
        h = jnp.dot(x_ref[...], w0_ref[...], preferred_element_type=jnp.float32)
        h = gelu(h + b0_ref[...])

        # Layers 1 and 2 (padded 3H -> padded 3H); GELU / bias math in f32.
        h = jnp.dot(h.astype(cdt), w1_ref[...], preferred_element_type=jnp.float32)
        h = gelu(h + b1_ref[...])
        h = jnp.dot(h.astype(cdt), w2_ref[...], preferred_element_type=jnp.float32)
        h = gelu(h + b2_ref[...])

        # Final projection (padded 3H -> 1), written lane-dense as (1, 1, tile_m).
        if use_matmul_final:
            # Large HP: one MXU matmul, then an XLU move onto the lane axis.
            y = jnp.dot(h.astype(cdt), wf_ref[...].astype(cdt).T,
                        preferred_element_type=jnp.float32)          # (tile_m, 1)
        else:
            # Small HP: VALU mul + XLU lane-reduce; keeps the MXU free of a
            # 1-column matmul that would cost as much as a whole hidden layer.
            y = jnp.sum(h * wf_ref[...], axis=-1, keepdims=True)      # (tile_m, 1)
        y = y.reshape(1, 1, -1) + bf_ref[...]
        out_ref[...] = y.astype(out_ref.dtype)

    return kernel


def _const_spec(shape):
    """Whole-array BlockSpec with a constant index_map (operand fetched once).

    Requests a single pipeline buffer (no point double-buffering a constant);
    falls back to the default if this Pallas version lacks pipeline_mode.
    """
    index_map = lambda i: (0,) * len(shape)
    try:
        return pl.BlockSpec(shape, index_map, pipeline_mode=pl.Buffered(1))
    except Exception:  # pragma: no cover - older Pallas without pipeline_mode kwarg
        return pl.BlockSpec(shape, index_map)


def decoder_forward(params, r, z, target_x, *, tile_m=512,
                    compute_dtype=jnp.bfloat16, approximate_gelu=False):
    """params: dict of transposed weights / biases (see init_decoder_params).
    r, z: (B, T, H); target_x: (B, T, D).  Returns (B, T, 1) float32.

    tile_m: row tile (sweep up to 1024-2048 on v6e for large N)."""
    B, T, H = r.shape
    D = target_x.shape[-1]
    N = B * T
    H3 = 3 * H
    HP = ((H3 + 127) // 128) * 128            # hidden width, padded to 128 lanes
    IN = 2 * H + D                            # fused input width [r|z|tx]
    INP = ((IN + 127) // 128) * 128           # ... padded to 128 lanes

    compute_dtype = jnp.dtype(compute_dtype)

    # ---------------- parameter prep (f32 math, then cast) ----------------
    w0, b0 = params["w0"], params["b0"]
    w0_r, w0_z, w0_t = w0[:H], w0[H:2 * H], w0[2 * H:]

    # Fold the target projection into the first layer (linear-after-linear).
    w0_t_fold = params["wp"] @ w0_t                        # (D, 3H)
    b0_fold = params["bp"] @ w0_t + b0                     # (1, 3H)

    def pad2(a, rows, cols):
        return jnp.pad(a, ((0, rows - a.shape[0]), (0, cols - a.shape[1])))

    # Stacked first-layer weight for the fused [r|z|tx] input stream.
    w0_stack = jnp.concatenate([w0_r, w0_z, w0_t_fold], axis=0)    # (2H+D, 3H)
    w0_p = pad2(w0_stack, INP, HP).astype(compute_dtype)
    b0_p = pad2(b0_fold, 1, HP)                                    # f32
    w1_p = pad2(params["w1"], HP, HP).astype(compute_dtype)
    b1_p = pad2(params["b1"], 1, HP)
    w2_p = pad2(params["w2"], HP, HP).astype(compute_dtype)
    b2_p = pad2(params["b2"], 1, HP)
    wf_p = pad2(params["wf"].T, 1, HP)                             # (1, HP), f32
    bf = params["bf"].reshape(1, 1)                                # (1, 1),  f32

    # ---------------- fused, padded row stream ----------------
    x2 = jnp.concatenate([r.reshape(N, H), z.reshape(N, H),
                          target_x.reshape(N, D)], axis=-1)        # (N, 2H+D)

    # Row tile: sublane-aligned and >= 2 grid steps (when N > 8) so v7x's
    # second TensorCore gets work on the "parallel" axis.
    tile_m = max(8, (tile_m // 8) * 8)
    half = max(8, (((-(-N // 2)) + 7) // 8) * 8)
    tile_m = min(tile_m, half)
    n_pad = (-(-N // tile_m)) * tile_m
    n_blk = n_pad // tile_m
    x2 = pad2(x2, n_pad, INP).astype(compute_dtype)

    # ---------------- VMEM budget ----------------
    cb = compute_dtype.itemsize
    vmem_est = (2 * tile_m * INP * cb                       # input double-buffer
                + 2 * tile_m * 4                            # output double-buffer
                + (INP * HP + 2 * HP * HP) * cb             # weights (single-buffered)
                + (4 * HP + 1) * 4                          # biases + wf + bf (f32)
                + 3 * tile_m * HP * 4)                      # f32 activation intermediates
    vmem_limit = int(min(max(2 * vmem_est, 32 * 1024 * 1024), 64 * 1024 * 1024))

    kernel = _make_decoder_kernel(use_matmul_final=(HP >= 512),
                                  approximate_gelu=approximate_gelu)

    out = pl.pallas_call(
        kernel,
        out_shape=jax.ShapeDtypeStruct((n_blk, 1, tile_m), jnp.float32),
        grid_spec=pltpu.PrefetchScalarGridSpec(
            num_scalar_prefetch=0,
            grid=(n_blk,),
            in_specs=[
                pl.BlockSpec((tile_m, INP), lambda i: (i, 0)),   # fused [r|z|tx] rows
                _const_spec((INP, HP)),    # stacked w0 (wp folded in)
                _const_spec((1, HP)),      # b0 (bp folded in)
                _const_spec((HP, HP)),     # w1
                _const_spec((1, HP)),      # b1
                _const_spec((HP, HP)),     # w2
                _const_spec((1, HP)),      # b2
                _const_spec((1, HP)),      # wf (row vector)
                _const_spec((1, 1)),       # bf
            ],
            out_specs=pl.BlockSpec((1, 1, tile_m), lambda i: (i, 0, 0)),
        ),
        compiler_params=pltpu.CompilerParams(
            dimension_semantics=("parallel",),
            vmem_limit_bytes=vmem_limit),
    )(x2, w0_p, b0_p, w1_p, b1_p, w2_p, b2_p, wf_p, bf)

    return out.reshape(-1)[:N].reshape(B, T, 1)


def init_decoder_params(key, num_hidden, input_dim):
    """Deterministic parameter init matching the PyTorch module's shapes.

    nn.Linear weight is (out, in); we store the transpose (in, out) so the math is
    x @ W.  xavier_uniform bound = gain * sqrt(6 / (fan_in + fan_out)); biases use
    PyTorch's default uniform(-1/sqrt(fan_in), 1/sqrt(fan_in))."""
    H, D = num_hidden, input_dim
    H3 = 3 * H
    keys = jax.random.split(key, 10)

    def xavier(k, in_dim, out_dim, gain):
        bound = gain * math.sqrt(6.0 / (in_dim + out_dim))
        w = jax.random.uniform(k, (out_dim, in_dim), jnp.float32, -bound, bound)
        return w.T

    def bias(k, in_dim, out_dim):
        bound = 1.0 / math.sqrt(in_dim)
        return jax.random.uniform(k, (1, out_dim), jnp.float32, -bound, bound)

    gain_lin = 1.0
    gain_relu = math.sqrt(2.0)

    return {
        "wp": xavier(keys[0], D, H, gain_lin),
        "bp": bias(keys[1], D, H),
        "w0": xavier(keys[2], H3, H3, gain_relu),
        "b0": bias(keys[3], H3, H3),
        "w1": xavier(keys[4], H3, H3, gain_relu),
        "b1": bias(keys[5], H3, H3),
        "w2": xavier(keys[6], H3, H3, gain_relu),
        "b2": bias(keys[7], H3, H3),
        "wf": xavier(keys[8], H3, 1, gain_lin),
        "bf": bias(keys[9], H3, 1),
    }


def decoder_reference(params, r, z, target_x):
    """Plain-JAX reference of the PyTorch forward (unfolded / unpadded, f32)."""
    tx = target_x @ params["wp"] + params["bp"]
    hidden = jnp.concatenate([r, z, tx], axis=-1)
    for i in range(3):
        hidden = hidden @ params[f"w{i}"] + params[f"b{i}"]
        hidden = 0.5 * hidden * (1.0 + lax.erf(hidden / math.sqrt(2.0)))
    return hidden @ params["wf"] + params["bf"]


if __name__ == "__main__":
    key = jax.random.PRNGKey(0)
    k_param, k_r, k_z, k_x = jax.random.split(key, 4)

    B, T = 2, 8          # batch, num_targets
    H = 32               # num_hidden
    D = 4                # input_dim

    params = init_decoder_params(k_param, H, D)
    r = jax.random.normal(k_r, (B, T, H), jnp.float32)
    z = jax.random.normal(k_z, (B, T, H), jnp.float32)
    target_x = jax.random.normal(k_x, (B, T, D), jnp.float32)

    y_ref = decoder_reference(params, r, z, target_x)

    # fp32 path: tight correctness check (only fp rounding-order differs from ref).
    y_f32 = jax.block_until_ready(
        decoder_forward(params, r, z, target_x, compute_dtype=jnp.float32))
    assert y_f32.shape == (B, T, 1)
    assert jnp.allclose(y_f32, y_ref, atol=1e-4, rtol=1e-4), (
        float(jnp.max(jnp.abs(y_f32 - y_ref))))

    # bf16 path (default, MXU-native): loose smoke check vs the fp32 reference.
    y_bf16 = jax.block_until_ready(decoder_forward(params, r, z, target_x))
    assert y_bf16.shape == (B, T, 1)
    assert jnp.allclose(y_bf16, y_ref, atol=1e-1, rtol=1e-1), (
        float(jnp.max(jnp.abs(y_bf16 - y_ref))))

    print("KERNEL_OK")
</pallas_src>

<mosaic_0001>
module attributes {stable_mosaic.version = 11 : i64} {
  func.func @kernel(%arg0: i32, %arg1: memref<8x128xf32, #tpu.memory_space<vmem>>, %arg2: memref<128x128xf32, #tpu.memory_space<vmem>>, %arg3: memref<1x128xf32, #tpu.memory_space<vmem>>, %arg4: memref<128x128xf32, #tpu.memory_space<vmem>>, %arg5: memref<1x128xf32, #tpu.memory_space<vmem>>, %arg6: memref<128x128xf32, #tpu.memory_space<vmem>>, %arg7: memref<1x128xf32, #tpu.memory_space<vmem>>, %arg8: memref<1x128xf32, #tpu.memory_space<vmem>>, %arg9: memref<1x1xf32, #tpu.memory_space<vmem>>, %arg10: memref<1x1x8xf32, #tpu.memory_space<vmem>>) attributes {dimension_semantics = [#tpu.dimension_semantics<parallel>], iteration_bounds = array<i64: 2>, scalar_prefetch = 0 : i64, scratch_operands = 0 : i64, tpu.core_type = #tpu.core_type<tc>, window_params = [{transform_indices = @transform_0, window_bounds = array<i64: 8, 128>}, {pipeline_mode = #tpu.pipeline_mode<synchronous>, transform_indices = @transform_1, window_bounds = array<i64: 128, 128>}, {pipeline_mode = #tpu.pipeline_mode<synchronous>, transform_indices = @transform_2, window_bounds = array<i64: 1, 128>}, {pipeline_mode = #tpu.pipeline_mode<synchronous>, transform_indices = @transform_3, window_bounds = array<i64: 128, 128>}, {pipeline_mode = #tpu.pipeline_mode<synchronous>, transform_indices = @transform_4, window_bounds = array<i64: 1, 128>}, {pipeline_mode = #tpu.pipeline_mode<synchronous>, transform_indices = @transform_5, window_bounds = array<i64: 128, 128>}, {pipeline_mode = #tpu.pipeline_mode<synchronous>, transform_indices = @transform_6, window_bounds = array<i64: 1, 128>}, {pipeline_mode = #tpu.pipeline_mode<synchronous>, transform_indices = @transform_7, window_bounds = array<i64: 1, 128>}, {pipeline_mode = #tpu.pipeline_mode<synchronous>, transform_indices = @transform_8, window_bounds = array<i64: 1, 1>}, {transform_indices = @transform_9, window_bounds = array<i64: 1, 1, 8>}]} {
    %c0 = arith.constant 0 : index
    %c0_0 = arith.constant 0 : index
    %0 = vector.load %arg1[%c0, %c0_0] : memref<8x128xf32, #tpu.memory_space<vmem>>, vector<8x128xf32>
    %c0_1 = arith.constant 0 : index
    %c0_2 = arith.constant 0 : index
    %1 = vector.load %arg2[%c0_1, %c0_2] : memref<128x128xf32, #tpu.memory_space<vmem>>, vector<128x128xf32>
    %cst = arith.constant dense<0.000000e+00> : vector<8x128xf32>
    %2 = tpu.matmul %0, %1, %cst {dimension_numbers = #tpu.dot_dimension_numbers<[1], [0], [0], [1], [0, 0, 1, 1], [], []>} : vector<8x128xf32>, vector<128x128xf32>, vector<8x128xf32> -> vector<8x128xf32>
    %c0_3 = arith.constant 0 : index
    %c0_4 = arith.constant 0 : index
    %3 = vector.load %arg3[%c0_3, %c0_4] : memref<1x128xf32, #tpu.memory_space<vmem>>, vector<1x128xf32>
    %4 = vector.broadcast %3 : vector<1x128xf32> to vector<8x128xf32>
    %5 = arith.addf %2, %4 : vector<8x128xf32>
    %cst_5 = arith.constant 5.000000e-01 : f32
    %6 = vector.broadcast %cst_5 : f32 to vector<8x128xf32>
    %7 = arith.mulf %6, %5 : vector<8x128xf32>
    %cst_6 = arith.constant 0.707106769 : f32
    %8 = vector.broadcast %cst_6 : f32 to vector<8x128xf32>
    %9 = arith.mulf %5, %8 : vector<8x128xf32>
    %10 = math.erf %9 : vector<8x128xf32>
    %cst_7 = arith.constant 1.000000e+00 : f32
    %11 = vector.broadcast %cst_7 : f32 to vector<8x128xf32>
    %12 = arith.addf %11, %10 : vector<8x128xf32>
    %13 = arith.mulf %7, %12 : vector<8x128xf32>
    %c0_8 = arith.constant 0 : index
    %c0_9 = arith.constant 0 : index
    %14 = vector.load %arg4[%c0_8, %c0_9] : memref<128x128xf32, #tpu.memory_space<vmem>>, vector<128x128xf32>
    %cst_10 = arith.constant dense<0.000000e+00> : vector<8x128xf32>
    %15 = tpu.matmul %13, %14, %cst_10 {dimension_numbers = #tpu.dot_dimension_numbers<[1], [0], [0], [1], [0, 0, 1, 1], [], []>} : vector<8x128xf32>, vector<128x128xf32>, vector<8x128xf32> -> vector<8x128xf32>
    %c0_11 = arith.constant 0 : index
    %c0_12 = arith.constant 0 : index
    %16 = vector.load %arg5[%c0_11, %c0_12] : memref<1x128xf32, #tpu.memory_space<vmem>>, vector<1x128xf32>
    %17 = vector.broadcast %16 : vector<1x128xf32> to vector<8x128xf32>
    %18 = arith.addf %15, %17 : vector<8x128xf32>
    %cst_13 = arith.constant 5.000000e-01 : f32
    %19 = vector.broadcast %cst_13 : f32 to vector<8x128xf32>
    %20 = arith.mulf %19, %18 : vector<8x128xf32>
    %cst_14 = arith.constant 0.707106769 : f32
    %21 = vector.broadcast %cst_14 : f32 to vector<8x128xf32>
    %22 = arith.mulf %18, %21 : vector<8x128xf32>
    %23 = math.erf %22 : vector<8x128xf32>
    %cst_15 = arith.constant 1.000000e+00 : f32
    %24 = vector.broadcast %cst_15 : f32 to vector<8x128xf32>
    %25 = arith.addf %24, %23 : vector<8x128xf32>
    %26 = arith.mulf %20, %25 : vector<8x128xf32>
    %c0_16 = arith.constant 0 : index
    %c0_17 = arith.constant 0 : index
    %27 = vector.load %arg6[%c0_16, %c0_17] : memref<128x128xf32, #tpu.memory_space<vmem>>, vector<128x128xf32>
    %cst_18 = arith.constant dense<0.000000e+00> : vector<8x128xf32>
    %28 = tpu.matmul %26, %27, %cst_18 {dimension_numbers = #tpu.dot_dimension_numbers<[1], [0], [0], [1], [0, 0, 1, 1], [], []>} : vector<8x128xf32>, vector<128x128xf32>, vector<8x128xf32> -> vector<8x128xf32>
    %c0_19 = arith.constant 0 : index
    %c0_20 = arith.constant 0 : index
    %29 = vector.load %arg7[%c0_19, %c0_20] : memref<1x128xf32, #tpu.memory_space<vmem>>, vector<1x128xf32>
    %30 = vector.broadcast %29 : vector<1x128xf32> to vector<8x128xf32>
    %31 = arith.addf %28, %30 : vector<8x128xf32>
    %cst_21 = arith.constant 5.000000e-01 : f32
    %32 = vector.broadcast %cst_21 : f32 to vector<8x128xf32>
    %33 = arith.mulf %32, %31 : vector<8x128xf32>
    %cst_22 = arith.constant 0.707106769 : f32
    %34 = vector.broadcast %cst_22 : f32 to vector<8x128xf32>
    %35 = arith.mulf %31, %34 : vector<8x128xf32>
    %36 = math.erf %35 : vector<8x128xf32>
    %cst_23 = arith.constant 1.000000e+00 : f32
    %37 = vector.broadcast %cst_23 : f32 to vector<8x128xf32>
    %38 = arith.addf %37, %36 : vector<8x128xf32>
    %39 = arith.mulf %33, %38 : vector<8x128xf32>
    %c0_24 = arith.constant 0 : index
    %c0_25 = arith.constant 0 : index
    %40 = vector.load %arg8[%c0_24, %c0_25] : memref<1x128xf32, #tpu.memory_space<vmem>>, vector<1x128xf32>
    %41 = vector.broadcast %40 : vector<1x128xf32> to vector<8x128xf32>
    %42 = arith.mulf %39, %41 : vector<8x128xf32>
    %cst_26 = arith.constant dense<0.000000e+00> : vector<8xf32>
    %43 = vector.multi_reduction <add>, %42, %cst_26 [1] : vector<8x128xf32> to vector<8xf32>
    %44 = vector.shape_cast %43 : vector<8xf32> to vector<8x1xf32>
    %45 = vector.shape_cast %44 : vector<8x1xf32> to vector<1x1x8xf32>
    %c0_27 = arith.constant 0 : index
    %c0_28 = arith.constant 0 : index
    %46 = vector.load %arg9[%c0_27, %c0_28] : memref<1x1xf32, #tpu.memory_space<vmem>>, vector<1x1xf32>
    %47 = vector.shape_cast %46 : vector<1x1xf32> to vector<1x1x1xf32>
    %48 = vector.broadcast %47 : vector<1x1x1xf32> to vector<1x1x8xf32>
    %49 = arith.addf %45, %48 : vector<1x1x8xf32>
    %c0_29 = arith.constant 0 : index
    %c0_30 = arith.constant 0 : index
    %c0_31 = arith.constant 0 : index
    %50 = vector.load %arg10[%c0_29, %c0_30, %c0_31] : memref<1x1x8xf32, #tpu.memory_space<vmem>>, vector<1x1x8xf32>
    tpu.vector_store %arg10[%c0_29, %c0_30, %c0_31], %49 {strides = array<i32>} : memref<1x1x8xf32, #tpu.memory_space<vmem>>, vector<1x1x8xf32>,
    return
  }
  func.func @transform_0(%arg0: i32) -> (i32, i32) {
    %c0_i32 = arith.constant 0 : i32
    %c0_i32_0 = arith.constant 0 : i32
    return %arg0, %c0_i32 : i32, i32
  }
  func.func @transform_1(%arg0: i32) -> (i32, i32) {
    %c0_i32 = arith.constant 0 : i32
    %c0_i32_0 = arith.constant 0 : i32
    %c0_i32_1 = arith.constant 0 : i32
    return %c0_i32, %c0_i32_0 : i32, i32
  }
  func.func @transform_2(%arg0: i32) -> (i32, i32) {
    %c0_i32 = arith.constant 0 : i32
    %c0_i32_0 = arith.constant 0 : i32
    %c0_i32_1 = arith.constant 0 : i32
    return %c0_i32, %c0_i32_0 : i32, i32
  }
  func.func @transform_3(%arg0: i32) -> (i32, i32) {
    %c0_i32 = arith.constant 0 : i32
    %c0_i32_0 = arith.constant 0 : i32
    %c0_i32_1 = arith.constant 0 : i32
    return %c0_i32, %c0_i32_0 : i32, i32
  }
  func.func @transform_4(%arg0: i32) -> (i32, i32) {
    %c0_i32 = arith.constant 0 : i32
    %c0_i32_0 = arith.constant 0 : i32
    %c0_i32_1 = arith.constant 0 : i32
    return %c0_i32, %c0_i32_0 : i32, i32
  }
  func.func @transform_5(%arg0: i32) -> (i32, i32) {
    %c0_i32 = arith.constant 0 : i32
    %c0_i32_0 = arith.constant 0 : i32
    %c0_i32_1 = arith.constant 0 : i32
    return %c0_i32, %c0_i32_0 : i32, i32
  }
  func.func @transform_6(%arg0: i32) -> (i32, i32) {
    %c0_i32 = arith.constant 0 : i32
    %c0_i32_0 = arith.constant 0 : i32
    %c0_i32_1 = arith.constant 0 : i32
    return %c0_i32, %c0_i32_0 : i32, i32
  }
  func.func @transform_7(%arg0: i32) -> (i32, i32) {
    %c0_i32 = arith.constant 0 : i32
    %c0_i32_0 = arith.constant 0 : i32
    %c0_i32_1 = arith.constant 0 : i32
    return %c0_i32, %c0_i32_0 : i32, i32
  }
  func.func @transform_8(%arg0: i32) -> (i32, i32) {
    %c0_i32 = arith.constant 0 : i32
    %c0_i32_0 = arith.constant 0 : i32
    %c0_i32_1 = arith.constant 0 : i32
    return %c0_i32, %c0_i32_0 : i32, i32
  }
  func.func @transform_9(%arg0: i32) -> (i32, i32, i32) {
    %c0_i32 = arith.constant 0 : i32
    %c0_i32_0 = arith.constant 0 : i32
    %c0_i32_1 = arith.constant 0 : i32
    return %arg0, %c0_i32, %c0_i32_0 : i32, i32, i32
  }
}

</mosaic_0001>

<llo_original>
// kernel: tpu_custom_call.1
$region0: #{tpu_custom_call.1}
  #allocation0 [shape = 'u32[]', space=smem, size = 0x4, offset = 0x4, fixed_abs, tag = 'smem constant byte address 0x4 - core index']
  #allocation1 [shape = 'u32[144,128]{1,0:T(1,128)}', space=vmem, size = 0x12000, scoped, tag = 'internal scratch']
  #allocation2 [shape = 'f32[1,1]{1,0:T(1,128)S(1)}', space=vmem, size = 0x200, scoped, tag = 'scoped memory for tpu_custom_call.1']
  %s0 = inlined_call_operand.hbm [shape: f32[16,128], index: 0, kind: input, shape index: {}]
  %s1 = inlined_call_operand.hbm [shape: f32[128,128], index: 1, kind: input, shape index: {}]
  %s2 = inlined_call_operand.vmem [shape: f32[1,128], index: 2, kind: input, shape index: {}]
  %s3 = inlined_call_operand.hbm [shape: f32[128,128], index: 3, kind: input, shape index: {}]
  %s4 = inlined_call_operand.vmem [shape: f32[1,128], index: 4, kind: input, shape index: {}]
  %s5 = inlined_call_operand.hbm [shape: f32[128,128], index: 5, kind: input, shape index: {}]
  %s6 = inlined_call_operand.vmem [shape: f32[1,128], index: 6, kind: input, shape index: {}]
  %s7 = inlined_call_operand.vmem [shape: f32[1,128], index: 7, kind: input, shape index: {}]
  %s8 = inlined_call_operand.<no memory space> [shape: f32[1,1], index: 8, kind: input, shape index: {}]
  %s9 = inlined_call_operand.hbm [shape: f32[2,1,8], index: 9, kind: output, shape index: {}]
  %s10 = sld [smem:[#allocation0]]
  $region85: #{tpu_custom_call.1} parent=0
    _
  %s12 = ssub.s32 1, %s10
  %s13 = scalar_select 0, %s12, %s10
  %v14 = vstv %s8
  %15 = vst [vmem:[#allocation2] sm:$0x1] %v14
  $region1: #{tpu_custom_call.1} parent=0
    #allocation3 [shape = 'u8[8192]{0}', space=vmem, size = 0x2000, scoped, tag = 'input window, operand 0']
    #allocation4 [shape = 's32[2]{0}', space=sflag, size = 0x8, scoped, tag = 'scoped memory for tpu_custom_call.1']
    #allocation5 [shape = 's32[2]{0}', space=sflag, size = 0x8, scoped, tag = 'scoped memory for tpu_custom_call.1']
    #allocation6 [shape = 'u8[65536]{0}', space=vmem, size = 0x10000, scoped, tag = 'input window, operand 1, single buffered']
    #allocation7 [shape = 's32[1]{0}', space=sflag, size = 0x4, scoped, tag = 'scoped memory for tpu_custom_call.1']
    #allocation8 [shape = 'u8[65536]{0}', space=vmem, size = 0x10000, scoped, tag = 'input window, operand 3, single buffered']
    #allocation9 [shape = 'u8[65536]{0}', space=vmem, size = 0x10000, scoped, tag = 'input window, operand 5, single buffered']
    #allocation10 [shape = 's32[1]{0}', space=sflag, size = 0x4, scoped, tag = 'scoped memory for tpu_custom_call.1']
    #allocation11 [shape = 'u8[1024]{0}', space=vmem, size = 0x400, scoped, tag = 'output window, operand 0']
    %16 = vsyncpa [#allocation4], 0
    %s17 = scalar_lea.sflag [#allocation4], 1
    %18 = vsyncpa %s17, 0
    %19 = vsyncpa [#allocation7], 0
    %20 = vsyncpa [#allocation10], 0
    %21 = vsyncpa [#allocation5], 0
    %s22 = scalar_lea.sflag [#allocation5], 1
    %23 = vsyncpa %s22, 0
    loop: start=0, step=1, limit=4
    $region2: #{tpu_custom_call.1} parent=1 // loop_pre_header
      _
    $region3: #{tpu_custom_call.1} parent=1 // loop_header
      %s25 = sphi 0, %s29
      %p26 = scmp.ge.s32.totalorder %s25, 4
      %s35 = sphi 0, %s37
      %s38 = sphi 0, %s35
      %s39 = sphi 0, %s38
      %s55 = sphi 0, %s39
      %s59 = sphi 0, %s59
      %s61 = sphi 0, %s59
      %s62 = sphi 0, %s61
      %s76 = sphi 0, %s62
      %s80 = sphi 0, %s80
      %s82 = sphi 0, %s80
      %s83 = sphi 0, %s82
      %s97 = sphi 0, %s83
      %s101 = sphi 0, %s101
      %s103 = sphi 0, %s101
      %s104 = sphi 0, %s103
      %s118 = sphi 0, %s104
      %s122 = sphi 0, %s122
      %s124 = sphi 0, %s122
      %s125 = sphi 0, %s124
      %s139 = sphi 0, %s125
      %s143 = sphi 0, %s143
      %s145 = sphi 0, %s143
      %s146 = sphi 0, %s145
      %s160 = sphi 0, %s146
      %s164 = sphi 0, %s164
      %s166 = sphi 0, %s164
      %s167 = sphi 0, %s166
      %s181 = sphi 0, %s167
      %s185 = sphi 0, %s185
      %s187 = sphi 0, %s185
      %s188 = sphi 0, %s187
      %s202 = sphi 0, %s188
      %s206 = sphi 0, %s206
      %s208 = sphi 0, %s206
      %s209 = sphi 0, %s208
      %s223 = sphi 0, %s209
      %s229 = sphi 0, %s231
      %s232 = sphi 0, %s229
      %s233 = sphi 0, %s232
      %s249 = sphi 0, %s233
    $region4: #{tpu_custom_call.1} parent=1 // loop_header_branch
      %28 = sbr.rel (%p26) target = $region8
    $region5: #{tpu_custom_call.1} parent=1 // loop_body
      %s30 = ssub.s32 %s25, 1
      %s31 = ssub.s32 %s25, 2
      %s32 = sadd.s32 %s25, 1
      %s33 = ssub.s32 %s25, %s32
      %p34 = scmp.eq.s32.totalorder %s33, 0
      %s36 = sadd.s32 %s35, 1
      %s37 = scalar_select %p34, %s35, %s36
      %p40 = pneg %p34
      %p41 = scmp.eq.s32.totalorder %s25, 1
      %p42 = por %p40, %p41
      %p43 = scmp.ne.s32.totalorder %s35, %s38
      %p44 = scmp.eq.s32.totalorder %s25, 0
      %p45 = por %p43, %p44
      %p46 = scmp.ne.s32.totalorder %s35, %s38
      %p47 = scmp.eq.s32.totalorder %s30, 1
      %p48 = por %p46, %p47
      %p49 = scmp.ne.s32.totalorder %s38, %s39
      %p50 = scmp.eq.s32.totalorder %s30, 0
      %p51 = por %p49, %p50
      %p52 = scmp.ne.s32.totalorder %s38, %s39
      %p53 = scmp.eq.s32.totalorder %s31, 1
      %p54 = por %p52, %p53
      %p56 = scmp.ne.s32.totalorder %s39, %s55
      %p57 = scmp.eq.s32.totalorder %s31, 0
      %p58 = por %p56, %p57
      %s60 = sadd.s32 %s59, 1
      %p63 = scmp.eq.s32.totalorder %s25, 1
      %p64 = scmp.ne.s32.totalorder %s59, %s61
      %p65 = scmp.eq.s32.totalorder %s25, 0
      %p66 = por %p64, %p65
      %p67 = scmp.ne.s32.totalorder %s59, %s61
      %p68 = scmp.eq.s32.totalorder %s30, 1
      %p69 = por %p67, %p68
      %p70 = scmp.ne.s32.totalorder %s61, %s62
      %p71 = scmp.eq.s32.totalorder %s30, 0
      %p72 = por %p70, %p71
      %p73 = scmp.ne.s32.totalorder %s61, %s62
      %p74 = scmp.eq.s32.totalorder %s31, 1
      %p75 = por %p73, %p74
      %p77 = scmp.ne.s32.totalorder %s62, %s76
      %p78 = scmp.eq.s32.totalorder %s31, 0
      %p79 = por %p77, %p78
      %s81 = sadd.s32 %s80, 1
      %p84 = scmp.eq.s32.totalorder %s25, 1
      %p85 = scmp.ne.s32.totalorder %s80, %s82
      %p86 = scmp.eq.s32.totalorder %s25, 0
      %p87 = por %p85, %p86
      %p88 = scmp.ne.s32.totalorder %s80, %s82
      %p89 = scmp.eq.s32.totalorder %s30, 1
      %p90 = por %p88, %p89
      %p91 = scmp.ne.s32.totalorder %s82, %s83
      %p92 = scmp.eq.s32.totalorder %s30, 0
      %p93 = por %p91, %p92
      %p94 = scmp.ne.s32.totalorder %s82, %s83
      %p95 = scmp.eq.s32.totalorder %s31, 1
      %p96 = por %p94, %p95
      %p98 = scmp.ne.s32.totalorder %s83, %s97
      %p99 = scmp.eq.s32.totalorder %s31, 0
      %p100 = por %p98, %p99
      %s102 = sadd.s32 %s101, 1
      %p105 = scmp.eq.s32.totalorder %s25, 1
      %p106 = scmp.ne.s32.totalorder %s101, %s103
      %p107 = scmp.eq.s32.totalorder %s25, 0
      %p108 = por %p106, %p107
      %p109 = scmp.ne.s32.totalorder %s101, %s103
      %p110 = scmp.eq.s32.totalorder %s30, 1
      %p111 = por %p109, %p110
      %p112 = scmp.ne.s32.totalorder %s103, %s104
      %p113 = scmp.eq.s32.totalorder %s30, 0
      %p114 = por %p112, %p113
      %p115 = scmp.ne.s32.totalorder %s103, %s104
      %p116 = scmp.eq.s32.totalorder %s31, 1
      %p117 = por %p115, %p116
      %p119 = scmp.ne.s32.totalorder %s104, %s118
      %p120 = scmp.eq.s32.totalorder %s31, 0
      %p121 = por %p119, %p120
      %s123 = sadd.s32 %s122, 1
      %p126 = scmp.eq.s32.totalorder %s25, 1
      %p127 = scmp.ne.s32.totalorder %s122, %s124
      %p128 = scmp.eq.s32.totalorder %s25, 0
      %p129 = por %p127, %p128
      %p130 = scmp.ne.s32.totalorder %s122, %s124
      %p131 = scmp.eq.s32.totalorder %s30, 1
      %p132 = por %p130, %p131
      %p133 = scmp.ne.s32.totalorder %s124, %s125
      %p134 = scmp.eq.s32.totalorder %s30, 0
      %p135 = por %p133, %p134
      %p136 = scmp.ne.s32.totalorder %s124, %s125
      %p137 = scmp.eq.s32.totalorder %s31, 1
      %p138 = por %p136, %p137
      %p140 = scmp.ne.s32.totalorder %s125, %s139
      %p141 = scmp.eq.s32.totalorder %s31, 0
      %p142 = por %p140, %p141
      %s144 = sadd.s32 %s143, 1
      %p147 = scmp.eq.s32.totalorder %s25, 1
      %p148 = scmp.ne.s32.totalorder %s143, %s145
      %p149 = scmp.eq.s32.totalorder %s25, 0
      %p150 = por %p148, %p149
      %p151 = scmp.ne.s32.totalorder %s143, %s145
      %p152 = scmp.eq.s32.totalorder %s30, 1
      %p153 = por %p151, %p152
      %p154 = scmp.ne.s32.totalorder %s145, %s146
      %p155 = scmp.eq.s32.totalorder %s30, 0
      %p156 = por %p154, %p155
      %p157 = scmp.ne.s32.totalorder %s145, %s146
      %p158 = scmp.eq.s32.totalorder %s31, 1
      %p159 = por %p157, %p158
      %p161 = scmp.ne.s32.totalorder %s146, %s160
      %p162 = scmp.eq.s32.totalorder %s31, 0
      %p163 = por %p161, %p162
      %s165 = sadd.s32 %s164, 1
      %p168 = scmp.eq.s32.totalorder %s25, 1
      %p169 = scmp.ne.s32.totalorder %s164, %s166
      %p170 = scmp.eq.s32.totalorder %s25, 0
      %p171 = por %p169, %p170
      %p172 = scmp.ne.s32.totalorder %s164, %s166
      %p173 = scmp.eq.s32.totalorder %s30, 1
      %p174 = por %p172, %p173
      %p175 = scmp.ne.s32.totalorder %s166, %s167
      %p176 = scmp.eq.s32.totalorder %s30, 0
      %p177 = por %p175, %p176
      %p178 = scmp.ne.s32.totalorder %s166, %s167
      %p179 = scmp.eq.s32.totalorder %s31, 1
      %p180 = por %p178, %p179
      %p182 = scmp.ne.s32.totalorder %s167, %s181
      %p183 = scmp.eq.s32.totalorder %s31, 0
      %p184 = por %p182, %p183
      %s186 = sadd.s32 %s185, 1
      %p189 = scmp.eq.s32.totalorder %s25, 1
      %p190 = scmp.ne.s32.totalorder %s185, %s187
      %p191 = scmp.eq.s32.totalorder %s25, 0
      %p192 = por %p190, %p191
      %p193 = scmp.ne.s32.totalorder %s185, %s187
      %p194 = scmp.eq.s32.totalorder %s30, 1
      %p195 = por %p193, %p194
      %p196 = scmp.ne.s32.totalorder %s187, %s188
      %p197 = scmp.eq.s32.totalorder %s30, 0
      %p198 = por %p196, %p197
      %p199 = scmp.ne.s32.totalorder %s187, %s188
      %p200 = scmp.eq.s32.totalorder %s31, 1
      %p201 = por %p199, %p200
      %p203 = scmp.ne.s32.totalorder %s188, %s202
      %p204 = scmp.eq.s32.totalorder %s31, 0
      %p205 = por %p203, %p204
      %s207 = sadd.s32 %s206, 1
      %p210 = scmp.eq.s32.totalorder %s25, 1
      %p211 = scmp.ne.s32.totalorder %s206, %s208
      %p212 = scmp.eq.s32.totalorder %s25, 0
      %p213 = por %p211, %p212
      %p214 = scmp.ne.s32.totalorder %s206, %s208
      %p215 = scmp.eq.s32.totalorder %s30, 1
      %p216 = por %p214, %p215
      %p217 = scmp.ne.s32.totalorder %s208, %s209
      %p218 = scmp.eq.s32.totalorder %s30, 0
      %p219 = por %p217, %p218
      %p220 = scmp.ne.s32.totalorder %s208, %s209
      %p221 = scmp.eq.s32.totalorder %s31, 1
      %p222 = por %p220, %p221
      %p224 = scmp.ne.s32.totalorder %s209, %s223
      %p225 = scmp.eq.s32.totalorder %s31, 0
      %p226 = por %p224, %p225
      %s227 = ssub.s32 %s25, %s32
      %p228 = scmp.eq.s32.totalorder %s227, 0
      %s230 = sadd.s32 %s229, 1
      %s231 = scalar_select %p228, %s229, %s230
      %p234 = pneg %p228
      %p235 = scmp.eq.s32.totalorder %s25, 1
      %p236 = por %p234, %p235
      %p237 = scmp.ne.s32.totalorder %s229, %s232
      %p238 = scmp.eq.s32.totalorder %s25, 0
      %p239 = por %p237, %p238
      %p240 = scmp.ne.s32.totalorder %s229, %s232
      %p241 = scmp.eq.s32.totalorder %s30, 1
      %p242 = por %p240, %p241
      %p243 = scmp.ne.s32.totalorder %s232, %s233
      %p244 = scmp.eq.s32.totalorder %s30, 0
      %p245 = por %p243, %p244
      %p246 = scmp.ne.s32.totalorder %s232, %s233
      %p247 = scmp.eq.s32.totalorder %s31, 1
      %p248 = por %p246, %p247
      %p250 = scmp.ne.s32.totalorder %s233, %s249
      %p251 = scmp.eq.s32.totalorder %s31, 0
      %p252 = por %p250, %p251
      %p253 = scmp.le.s32.totalorder 1, %s25
      %p254 = scmp.lt.s32.totalorder %s25, 3
      %p255 = pnand %p253, %p254
      %p256 = pneg %p255
      // Predicated region
      $region9: #{tpu_custom_call.1} parent=5 // pred_check
        _
      $region10: #{tpu_custom_call.1} parent=5 // pred_check_branch
        %258 = sbr.rel (%p255) target = $region12
      $region11: #{tpu_custom_call.1} parent=5 // pred_region
        %s259 = ssub.s32 %s25, 1
        // Predicated region
        $region13: #{tpu_custom_call.1} parent=11 // pred_check
          %p260 = pneg %p72
        $region14: #{tpu_custom_call.1} parent=11 // pred_check_branch
          %262 = sbr.rel (%p260) target = $region16
        $region15: #{tpu_custom_call.1} parent=11 // pred_region
          %s264 = ssub.s32 2048, 2048
          %265 = vsyncadd [#allocation7], %s264
          %s266 = sshll.u32 [#allocation6], 4
          %s267 = int_to_ptr.vmem [resolvable:$true] %s266
          %272 = dma.hbm_to_vmem [thread:$0]  %s1, 2048, %s267, [#allocation7], 128, 128, 8
        $region16: #{tpu_custom_call.1} parent=11 // pred_fallthru
          _
        // Predicated region
        $region17: #{tpu_custom_call.1} parent=11 // pred_check
          %p273 = pneg %p93
        $region18: #{tpu_custom_call.1} parent=11 // pred_check_branch
          %275 = sbr.rel (%p273) target = $region20
        $region19: #{tpu_custom_call.1} parent=11 // pred_region
          _
        $region20: #{tpu_custom_call.1} parent=11 // pred_fallthru
          _
        // Predicated region
        $region21: #{tpu_custom_call.1} parent=11 // pred_check
          %p276 = pneg %p114
        $region22: #{tpu_custom_call.1} parent=11 // pred_check_branch
          %278 = sbr.rel (%p276) target = $region24
        $region23: #{tpu_custom_call.1} parent=11 // pred_region
          %s280 = ssub.s32 2048, 2048
          %281 = vsyncadd [#allocation7], %s280
          %s282 = sshll.u32 [#allocation8], 4
          %s283 = int_to_ptr.vmem [resolvable:$true] %s282
          %288 = dma.hbm_to_vmem [thread:$0]  %s3, 2048, %s283, [#allocation7], 128, 128, 8
        $region24: #{tpu_custom_call.1} parent=11 // pred_fallthru
          _
        // Predicated region
        $region25: #{tpu_custom_call.1} parent=11 // pred_check
          %p289 = pneg %p135
        $region26: #{tpu_custom_call.1} parent=11 // pred_check_branch
          %291 = sbr.rel (%p289) target = $region28
        $region27: #{tpu_custom_call.1} parent=11 // pred_region
          _
        $region28: #{tpu_custom_call.1} parent=11 // pred_fallthru
          _
        // Predicated region
        $region29: #{tpu_custom_call.1} parent=11 // pred_check
          %p292 = pneg %p156
        $region30: #{tpu_custom_call.1} parent=11 // pred_check_branch
          %294 = sbr.rel (%p292) target = $region32
        $region31: #{tpu_custom_call.1} parent=11 // pred_region
          %s296 = ssub.s32 2048, 2048
          %297 = vsyncadd [#allocation10], %s296
          %s298 = sshll.u32 [#allocation9], 4
          %s299 = int_to_ptr.vmem [resolvable:$true] %s298
          %304 = dma.hbm_to_vmem [thread:$0]  %s5, 2048, %s299, [#allocation10], 128, 128, 8
        $region32: #{tpu_custom_call.1} parent=11 // pred_fallthru
          _
        // Predicated region
        $region33: #{tpu_custom_call.1} parent=11 // pred_check
          %p305 = pneg %p177
        $region34: #{tpu_custom_call.1} parent=11 // pred_check_branch
          %307 = sbr.rel (%p305) target = $region36
        $region35: #{tpu_custom_call.1} parent=11 // pred_region
          _
        $region36: #{tpu_custom_call.1} parent=11 // pred_fallthru
          _
        // Predicated region
        $region37: #{tpu_custom_call.1} parent=11 // pred_check
          %p308 = pneg %p198
        $region38: #{tpu_custom_call.1} parent=11 // pred_check_branch
          %310 = sbr.rel (%p308) target = $region40
        $region39: #{tpu_custom_call.1} parent=11 // pred_region
          _
        $region40: #{tpu_custom_call.1} parent=11 // pred_fallthru
          _
        // Predicated region
        $region41: #{tpu_custom_call.1} parent=11 // pred_check
          %p311 = pneg %p219
        $region42: #{tpu_custom_call.1} parent=11 // pred_check_branch
          %313 = sbr.rel (%p311) target = $region44
        $region43: #{tpu_custom_call.1} parent=11 // pred_region
          _
        $region44: #{tpu_custom_call.1} parent=11 // pred_fallthru
          _
      $region12: #{tpu_custom_call.1} parent=5 // pred_fallthru
        _
      %p314 = scmp.lt.s32.totalorder %s25, 2
      // Predicated region
      $region45: #{tpu_custom_call.1} parent=5 // pred_check
        %p315 = pneg %p314
      $region46: #{tpu_custom_call.1} parent=5 // pred_check_branch
        %317 = sbr.rel (%p315) target = $region48
      $region47: #{tpu_custom_call.1} parent=5 // pred_region
        // Predicated region
        $region49: #{tpu_custom_call.1} parent=47 // pred_check
          %p318 = pneg %p45
        $region50: #{tpu_custom_call.1} parent=47 // pred_check_branch
          %320 = sbr.rel (%p318) target = $region52
        $region51: #{tpu_custom_call.1} parent=47 // pred_region
          %s321 = sand.u32 %s35, 1
          %s322 = scalar_lea.sflag [#allocation4], %s321
          %s323 = sand.u32 %s35, 1
          %s324 = smul.addr %s323, 8
          %s325 = scalar_lea.vmem [#allocation3], %s324
          %s327 = ssub.s32 128, 128
          %328 = vsyncadd %s322, %s327
          %s329 = smul.addr %s25, 128
          %s330 = scalar_lea.hbm %s0, %s329
          %s332 = sshll.u32 %s325, 4
          %s333 = int_to_ptr.vmem [resolvable:$true] %s332
          %335 = dma.hbm_to_vmem [thread:$0]  %s330, 128, %s333, %s322
        $region52: #{tpu_custom_call.1} parent=47 // pred_fallthru
          _
      $region48: #{tpu_custom_call.1} parent=5 // pred_fallthru
        _
      %p336 = scmp.le.s32.totalorder 1, %s25
      %p337 = scmp.lt.s32.totalorder %s25, 3
      %p338 = pnand %p336, %p337
      %p339 = pneg %p338
      // Predicated region
      $region53: #{tpu_custom_call.1} parent=5 // pred_check
        _
      $region54: #{tpu_custom_call.1} parent=5 // pred_check_branch
        %341 = sbr.rel (%p338) target = $region56
      $region55: #{tpu_custom_call.1} parent=5 // pred_region
        %s342 = ssub.s32 %s25, 1
        %s343 = sand.u32 %s38, 1
        %s344 = scalar_lea.sflag [#allocation4], %s343
        %s345 = sand.u32 %s38, 1
        %s346 = smul.addr %s345, 8
        %s347 = scalar_lea.vmem [#allocation3], %s346
        // Predicated region
        $region57: #{tpu_custom_call.1} parent=55 // pred_check
          %p348 = pneg %p51
        $region58: #{tpu_custom_call.1} parent=55 // pred_check_branch
          %350 = sbr.rel (%p348) target = $region60
        $region59: #{tpu_custom_call.1} parent=55 // pred_region
          %351 = dma.done %s344, 128
        $region60: #{tpu_custom_call.1} parent=55 // pred_fallthru
          _
        // Predicated region
        $region61: #{tpu_custom_call.1} parent=55 // pred_check
          %p352 = pneg %p72
        $region62: #{tpu_custom_call.1} parent=55 // pred_check_branch
          %354 = sbr.rel (%p352) target = $region64
        $region63: #{tpu_custom_call.1} parent=55 // pred_region
          %355 = dma.done [#allocation7], 2048
        $region64: #{tpu_custom_call.1} parent=55 // pred_fallthru
          _
        // Predicated region
        $region65: #{tpu_custom_call.1} parent=55 // pred_check
          %p356 = pneg %p114
        $region66: #{tpu_custom_call.1} parent=55 // pred_check_branch
          %358 = sbr.rel (%p356) target = $region68
        $region67: #{tpu_custom_call.1} parent=55 // pred_region
          %359 = dma.done [#allocation7], 2048
        $region68: #{tpu_custom_call.1} parent=55 // pred_fallthru
          _
        // Predicated region
        $region69: #{tpu_custom_call.1} parent=55 // pred_check
          %p360 = pneg %p156
        $region70: #{tpu_custom_call.1} parent=55 // pred_check_branch
          %362 = sbr.rel (%p360) target = $region72
        $region71: #{tpu_custom_call.1} parent=55 // pred_region
          %363 = dma.done [#allocation10], 2048
        $region72: #{tpu_custom_call.1} parent=55 // pred_fallthru
          _
        %s364 = sand.u32 %s38, 1
        %s365 = scalar_lea.sflag [#allocation4], %s364
        %s366 = sand.u32 %s38, 1
        %s367 = smul.addr %s366, 8
        %s368 = scalar_lea.vmem [#allocation3], %s367
        %p369 = pneg %p51
        %p370 = pneg %p48
        %p371 = pneg %p72
        %p372 = pneg %p69
        %p373 = pneg %p93
        %p374 = pneg %p90
        %p375 = pneg %p114
        %p376 = pneg %p111
        %p377 = pneg %p135
        %p378 = pneg %p132
        %p379 = pneg %p156
        %p380 = pneg %p153
        %p381 = pneg %p177
        %p382 = pneg %p174
        %p383 = pneg %p198
        %p384 = pneg %p195
        %p385 = pneg %p219
        %p386 = pneg %p216
        %p387 = pneg %p245
        %p388 = pneg %p242
        %s389 = sand.u32 %s232, 1
        %s390 = scalar_lea.sflag [#allocation5], %s389
        %s391 = sand.u32 %s232, 1
        %s392 = scalar_lea.vmem [#allocation11], %s391
        %v393 = vld [vmem:[%s347] sm:$0xff]
        %v394 = vld [vmem:[#allocation6] sm:$0xff]
        %v395 = vld [vmem:[#allocation6 + $0x8] sm:$0xff]
        %v396 = vld [vmem:[#allocation6 + $0x10] sm:$0xff]
        %v397 = vld [vmem:[#allocation6 + $0x18] sm:$0xff]
        %v398 = vld [vmem:[#allocation6 + $0x20] sm:$0xff]
        %v399 = vld [vmem:[#allocation6 + $0x28] sm:$0xff]
        %v400 = vld [vmem:[#allocation6 + $0x30] sm:$0xff]
        %v401 = vld [vmem:[#allocation6 + $0x38] sm:$0xff]
        %v402 = vld [vmem:[#allocation6 + $0x40] sm:$0xff]
        %v403 = vld [vmem:[#allocation6 + $0x48] sm:$0xff]
        %v404 = vld [vmem:[#allocation6 + $0x50] sm:$0xff]
        %v405 = vld [vmem:[#allocation6 + $0x58] sm:$0xff]
        %v406 = vld [vmem:[#allocation6 + $0x60] sm:$0xff]
        %v407 = vld [vmem:[#allocation6 + $0x68] sm:$0xff]
        %v408 = vld [vmem:[#allocation6 + $0x70] sm:$0xff]
        %v409 = vld [vmem:[#allocation6 + $0x78] sm:$0xff]
        %v410 = vld [vmem:[%s2] sm:$0x1]
        %v412 = vlaneseq
        %v413 = vshrl.u32 %v412, 7
        %v414 = vsub.s32 0, %v413
        %v415 = vrot.slane %v410, %v414
        %417 = vmatprep.subr.mxu0 0.0
        %418 = vmatpush1.msra.mxu0 %v409
        %419 = vmatprep.subr.mxu0 0.0
        %420 = vmatpush1.msra.mxu0 %v408
        %421 = vmatprep.subr.mxu0 0.0
        %422 = vmatpush1.msra.mxu0 %v407
        %423 = vmatprep.subr.mxu0 0.0
        %424 = vmatpush1.msra.mxu0 %v406
        %425 = vmatprep.subr.mxu0 0.0
        %426 = vmatpush1.msra.mxu0 %v405
        %427 = vmatprep.subr.mxu0 0.0
        %428 = vmatpush1.msra.mxu0 %v404
        %429 = vmatprep.subr.mxu0 0.0
        %430 = vmatpush1.msra.mxu0 %v403
        %431 = vmatprep.subr.mxu0 0.0
        %432 = vmatpush1.msra.mxu0 %v402
        %433 = vmatprep.subr.mxu0 0.0
        %434 = vmatpush1.msra.mxu0 %v401
        %435 = vmatprep.subr.mxu0 0.0
        %436 = vmatpush1.msra.mxu0 %v400
        %437 = vmatprep.subr.mxu0 0.0
        %438 = vmatpush1.msra.mxu0 %v399
        %439 = vmatprep.subr.mxu0 0.0
        %440 = vmatpush1.msra.mxu0 %v398
        %441 = vmatprep.subr.mxu0 0.0
        %442 = vmatpush1.msra.mxu0 %v397
        %443 = vmatprep.subr.mxu0 0.0
        %444 = vmatpush1.msra.mxu0 %v396
        %445 = vmatprep.subr.mxu0 0.0
        %446 = vmatpush1.msra.mxu0 %v395
        %447 = vmatprep.subr.mxu0 0.0
        %448 = vmatpush1.msra.mxu0 %v394
        %449 = vmatprep.subr.mxu0 0.0
        %450 = vmatpush2.msra.mxu0 0.0
        %451 = vmatprep.subr.mxu0 0.0
        %452 = vmatpush2.msra.mxu0 0.0
        %453 = vmatprep.subr.mxu0 0.0
        %454 = vmatpush2.msra.mxu0 0.0
        %455 = vmatprep.subr.mxu0 0.0
        %456 = vmatpush2.msra.mxu0 0.0
        %457 = vmatprep.subr.mxu0 0.0
        %458 = vmatpush2.msra.mxu0 0.0
        %459 = vmatprep.subr.mxu0 0.0
        %460 = vmatpush2.msra.mxu0 0.0
        %461 = vmatprep.subr.mxu0 0.0
        %462 = vmatpush2.msra.mxu0 0.0
        %463 = vmatprep.subr.mxu0 0.0
        %464 = vmatpush2.msra.mxu0 0.0
        %465 = vmatprep.subr.mxu0 0.0
        %466 = vmatpush2.msra.mxu0 0.0
        %467 = vmatprep.subr.mxu0 0.0
        %468 = vmatpush2.msra.mxu0 0.0
        %469 = vmatprep.subr.mxu0 0.0
        %470 = vmatpush2.msra.mxu0 0.0
        %471 = vmatprep.subr.mxu0 0.0
        %472 = vmatpush2.msra.mxu0 0.0
        %473 = vmatprep.subr.mxu0 0.0
        %474 = vmatpush2.msra.mxu0 0.0
        %475 = vmatprep.subr.mxu0 0.0
        %476 = vmatpush2.msra.mxu0 0.0
        %477 = vmatprep.subr.mxu0 0.0
        %478 = vmatpush2.msra.mxu0 0.0
        %479 = vmatprep.subr.mxu0 0.0
        %480 = vmatpush2.msra.mxu0 0.0
        %481 = vmatprep.mubr.f32.mxu0 0.0
        %482 = vmatmul.mubr.f32.gmra.mxu0 %v393
        %v483 = vpop.f32.mrf.mxu0
        %v484 = vadd.f32 %v415, %v483
        %v485 = vpop.f32.mrf.mxu0
        %486 = vdwg.mxu0
        %v487 = vmul.f32 %v484, 0.5
        %v488 = vmul.f32 %v484, 0.70710677
        %v489 = verf.f32.pop %v488
        %v490 = vadd.f32 %v489, 1.0
        %v491 = vmul.f32 %v487, %v490
        %v492 = vld [vmem:[#allocation8] sm:$0xff]
        %v493 = vld [vmem:[#allocation8 + $0x8] sm:$0xff]
        %v494 = vld [vmem:[#allocation8 + $0x10] sm:$0xff]
        %v495 = vld [vmem:[#allocation8 + $0x18] sm:$0xff]
        %v496 = vld [vmem:[#allocation8 + $0x20] sm:$0xff]
        %v497 = vld [vmem:[#allocation8 + $0x28] sm:$0xff]
        %v498 = vld [vmem:[#allocation8 + $0x30] sm:$0xff]
        %v499 = vld [vmem:[#allocation8 + $0x38] sm:$0xff]
        %v500 = vld [vmem:[#allocation8 + $0x40] sm:$0xff]
        %v501 = vld [vmem:[#allocation8 + $0x48] sm:$0xff]
        %v502 = vld [vmem:[#allocation8 + $0x50] sm:$0xff]
        %v503 = vld [vmem:[#allocation8 + $0x58] sm:$0xff]
        %v504 = vld [vmem:[#allocation8 + $0x60] sm:$0xff]
        %v505 = vld [vmem:[#allocation8 + $0x68] sm:$0xff]
        %v506 = vld [vmem:[#allocation8 + $0x70] sm:$0xff]
        %v507 = vld [vmem:[#allocation8 + $0x78] sm:$0xff]
        %v508 = vld [vmem:[%s4] sm:$0x1]
        %v510 = vlaneseq
        %v511 = vshrl.u32 %v510, 7
        %v512 = vsub.s32 0, %v511
        %v513 = vrot.slane %v508, %v512
        %515 = vmatprep.subr.mxu0 0.0
        %516 = vmatpush1.msra.mxu0 %v507
        %517 = vmatprep.subr.mxu0 0.0
        %518 = vmatpush1.msra.mxu0 %v506
        %519 = vmatprep.subr.mxu0 0.0
        %520 = vmatpush1.msra.mxu0 %v505
        %521 = vmatprep.subr.mxu0 0.0
        %522 = vmatpush1.msra.mxu0 %v504
        %523 = vmatprep.subr.mxu0 0.0
        %524 = vmatpush1.msra.mxu0 %v503
        %525 = vmatprep.subr.mxu0 0.0
        %526 = vmatpush1.msra.mxu0 %v502
        %527 = vmatprep.subr.mxu0 0.0
        %528 = vmatpush1.msra.mxu0 %v501
        %529 = vmatprep.subr.mxu0 0.0
        %530 = vmatpush1.msra.mxu0 %v500
        %531 = vmatprep.subr.mxu0 0.0
        %532 = vmatpush1.msra.mxu0 %v499
        %533 = vmatprep.subr.mxu0 0.0
        %534 = vmatpush1.msra.mxu0 %v498
        %535 = vmatprep.subr.mxu0 0.0
        %536 = vmatpush1.msra.mxu0 %v497
        %537 = vmatprep.subr.mxu0 0.0
        %538 = vmatpush1.msra.mxu0 %v496
        %539 = vmatprep.subr.mxu0 0.0
        %540 = vmatpush1.msra.mxu0 %v495
        %541 = vmatprep.subr.mxu0 0.0
        %542 = vmatpush1.msra.mxu0 %v494
        %543 = vmatprep.subr.mxu0 0.0
        %544 = vmatpush1.msra.mxu0 %v493
        %545 = vmatprep.subr.mxu0 0.0
        %546 = vmatpush1.msra.mxu0 %v492
        %547 = vmatprep.subr.mxu0 0.0
        %548 = vmatpush2.msra.mxu0 0.0
        %549 = vmatprep.subr.mxu0 0.0
        %550 = vmatpush2.msra.mxu0 0.0
        %551 = vmatprep.subr.mxu0 0.0
        %552 = vmatpush2.msra.mxu0 0.0
        %553 = vmatprep.subr.mxu0 0.0
        %554 = vmatpush2.msra.mxu0 0.0
        %555 = vmatprep.subr.mxu0 0.0
        %556 = vmatpush2.msra.mxu0 0.0
        %557 = vmatprep.subr.mxu0 0.0
        %558 = vmatpush2.msra.mxu0 0.0
        %559 = vmatprep.subr.mxu0 0.0
        %560 = vmatpush2.msra.mxu0 0.0
        %561 = vmatprep.subr.mxu0 0.0
        %562 = vmatpush2.msra.mxu0 0.0
        %563 = vmatprep.subr.mxu0 0.0
        %564 = vmatpush2.msra.mxu0 0.0
        %565 = vmatprep.subr.mxu0 0.0
        %566 = vmatpush2.msra.mxu0 0.0
        %567 = vmatprep.subr.mxu0 0.0
        %568 = vmatpush2.msra.mxu0 0.0
        %569 = vmatprep.subr.mxu0 0.0
        %570 = vmatpush2.msra.mxu0 0.0
        %571 = vmatprep.subr.mxu0 0.0
        %572 = vmatpush2.msra.mxu0 0.0
        %573 = vmatprep.subr.mxu0 0.0
        %574 = vmatpush2.msra.mxu0 0.0
        %575 = vmatprep.subr.mxu0 0.0
        %576 = vmatpush2.msra.mxu0 0.0
        %577 = vmatprep.subr.mxu0 0.0
        %578 = vmatpush2.msra.mxu0 0.0
        %579 = vmatprep.mubr.f32.mxu0 0.0
        %580 = vmatmul.mubr.f32.gmra.mxu0 %v491
        %v581 = vpop.f32.mrf.mxu0
        %v582 = vadd.f32 %v513, %v581
        %v583 = vpop.f32.mrf.mxu0
        %584 = vdwg.mxu0
        %v585 = vmul.f32 %v582, 0.5
        %v586 = vmul.f32 %v582, 0.70710677
        %v587 = verf.f32.pop %v586
        %v588 = vadd.f32 %v587, 1.0
        %v589 = vmul.f32 %v585, %v588
        %v590 = vld [vmem:[#allocation9] sm:$0xff]
        %v591 = vld [vmem:[#allocation9 + $0x8] sm:$0xff]
        %v592 = vld [vmem:[#allocation9 + $0x10] sm:$0xff]
        %v593 = vld [vmem:[#allocation9 + $0x18] sm:$0xff]
        %v594 = vld [vmem:[#allocation9 + $0x20] sm:$0xff]
        %v595 = vld [vmem:[#allocation9 + $0x28] sm:$0xff]
        %v596 = vld [vmem:[#allocation9 + $0x30] sm:$0xff]
        %v597 = vld [vmem:[#allocation9 + $0x38] sm:$0xff]
        %v598 = vld [vmem:[#allocation9 + $0x40] sm:$0xff]
        %v599 = vld [vmem:[#allocation9 + $0x48] sm:$0xff]
        %v600 = vld [vmem:[#allocation9 + $0x50] sm:$0xff]
        %v601 = vld [vmem:[#allocation9 + $0x58] sm:$0xff]
        %v602 = vld [vmem:[#allocation9 + $0x60] sm:$0xff]
        %v603 = vld [vmem:[#allocation9 + $0x68] sm:$0xff]
        %v604 = vld [vmem:[#allocation9 + $0x70] sm:$0xff]
        %v605 = vld [vmem:[#allocation9 + $0x78] sm:$0xff]
        %v606 = vld [vmem:[%s6] sm:$0x1]
        %v608 = vlaneseq
        %v609 = vshrl.u32 %v608, 7
        %v610 = vsub.s32 0, %v609
        %v611 = vrot.slane %v606, %v610
        %613 = vmatprep.subr.mxu0 0.0
        %614 = vmatpush1.msra.mxu0 %v605
        %615 = vmatprep.subr.mxu0 0.0
        %616 = vmatpush1.msra.mxu0 %v604
        %617 = vmatprep.subr.mxu0 0.0
        %618 = vmatpush1.msra.mxu0 %v603
        %619 = vmatprep.subr.mxu0 0.0
        %620 = vmatpush1.msra.mxu0 %v602
        %621 = vmatprep.subr.mxu0 0.0
        %622 = vmatpush1.msra.mxu0 %v601
        %623 = vmatprep.subr.mxu0 0.0
        %624 = vmatpush1.msra.mxu0 %v600
        %625 = vmatprep.subr.mxu0 0.0
        %626 = vmatpush1.msra.mxu0 %v599
        %627 = vmatprep.subr.mxu0 0.0
        %628 = vmatpush1.msra.mxu0 %v598
        %629 = vmatprep.subr.mxu0 0.0
        %630 = vmatpush1.msra.mxu0 %v597
        %631 = vmatprep.subr.mxu0 0.0
        %632 = vmatpush1.msra.mxu0 %v596
        %633 = vmatprep.subr.mxu0 0.0
        %634 = vmatpush1.msra.mxu0 %v595
        %635 = vmatprep.subr.mxu0 0.0
        %636 = vmatpush1.msra.mxu0 %v594
        %637 = vmatprep.subr.mxu0 0.0
        %638 = vmatpush1.msra.mxu0 %v593
        %639 = vmatprep.subr.mxu0 0.0
        %640 = vmatpush1.msra.mxu0 %v592
        %641 = vmatprep.subr.mxu0 0.0
        %642 = vmatpush1.msra.mxu0 %v591
        %643 = vmatprep.subr.mxu0 0.0
        %644 = vmatpush1.msra.mxu0 %v590
        %645 = vmatprep.subr.mxu0 0.0
        %646 = vmatpush2.msra.mxu0 0.0
        %647 = vmatprep.subr.mxu0 0.0
        %648 = vmatpush2.msra.mxu0 0.0
        %649 = vmatprep.subr.mxu0 0.0
        %650 = vmatpush2.msra.mxu0 0.0
        %651 = vmatprep.subr.mxu0 0.0
        %652 = vmatpush2.msra.mxu0 0.0
        %653 = vmatprep.subr.mxu0 0.0
        %654 = vmatpush2.msra.mxu0 0.0
        %655 = vmatprep.subr.mxu0 0.0
        %656 = vmatpush2.msra.mxu0 0.0
        %657 = vmatprep.subr.mxu0 0.0
        %658 = vmatpush2.msra.mxu0 0.0
        %659 = vmatprep.subr.mxu0 0.0
        %660 = vmatpush2.msra.mxu0 0.0
        %661 = vmatprep.subr.mxu0 0.0
        %662 = vmatpush2.msra.mxu0 0.0
        %663 = vmatprep.subr.mxu0 0.0
        %664 = vmatpush2.msra.mxu0 0.0
        %665 = vmatprep.subr.mxu0 0.0
        %666 = vmatpush2.msra.mxu0 0.0
        %667 = vmatprep.subr.mxu0 0.0
        %668 = vmatpush2.msra.mxu0 0.0
        %669 = vmatprep.subr.mxu0 0.0
        %670 = vmatpush2.msra.mxu0 0.0
        %671 = vmatprep.subr.mxu0 0.0
        %672 = vmatpush2.msra.mxu0 0.0
        %673 = vmatprep.subr.mxu0 0.0
        %674 = vmatpush2.msra.mxu0 0.0
        %675 = vmatprep.subr.mxu0 0.0
        %676 = vmatpush2.msra.mxu0 0.0
        %677 = vmatprep.mubr.f32.mxu0 0.0
        %678 = vmatmul.mubr.f32.gmra.mxu0 %v589
        %v679 = vpop.f32.mrf.mxu0
        %v680 = vadd.f32 %v611, %v679
        %v681 = vpop.f32.mrf.mxu0
        %682 = vdwg.mxu0
        %v683 = vmul.f32 %v680, 0.5
        %v684 = vmul.f32 %v680, 0.70710677
        %v685 = verf.f32.pop %v684
        %v686 = vadd.f32 %v685, 1.0
        %v687 = vmul.f32 %v683, %v686
        %v688 = vld [vmem:[%s7] sm:$0x1]
        %v690 = vlaneseq
        %v691 = vshrl.u32 %v690, 7
        %v692 = vsub.s32 0, %v691
        %v693 = vrot.slane %v688, %v692
        %v695 = vmul.f32 %v687, %v693
        %696 = vadd.xlane.f32.xlu0 %v695
        %v697 = vpop.xlane.xlu0 %696
        %v698 = vld [vmem:[#allocation2] sm:$0x1]
        %700 = vset.pattern.permute.xlu0 0
        %701 = vperm.xlu0 %700, %v698
        %v702 = vpop.permute.xlu0 %701
        %v704 = vlaneseq
        %v705 = vshrl.u32 %v704, 7
        %v706 = vsub.s32 0, %v705
        %v707 = vrot.slane %v702, %v706
        %v708 = vadd.f32 %v697, %v707
        %v710 = vlaneseq
        %v711 = vand.u32 %v710, 127
        %v712 = vlaneseq
        %v713 = vshrl.u32 %v712, 7
        %v714 = vsub.s32 %v711, %v713
        %v715 = vrot.slane %v708, %v714
        %vm717 = vcmask 57344
        %718 = vst.msk [vmem:[%s392] sm:$0x1] %vm717, %v715
        %s719 = sand.u32 %s232, 1
        %s720 = scalar_lea.sflag [#allocation5], %s719
        %s721 = sand.u32 %s232, 1
        %s722 = scalar_lea.vmem [#allocation11], %s721
        // Predicated region
        $region73: #{tpu_custom_call.1} parent=55 // pred_check
          %p723 = pneg %p242
        $region74: #{tpu_custom_call.1} parent=55 // pred_check_branch
          %725 = sbr.rel (%p723) target = $region76
        $region75: #{tpu_custom_call.1} parent=55 // pred_region
          %s727 = ssub.s32 16, 16
          %728 = vsyncadd %s720, %s727
          %s729 = smul.addr %s30, 16
          %s730 = scalar_lea.hbm %s9, %s729
          %s732 = sshll.u32 %s722, 4
          %s733 = int_to_ptr.vmem [resolvable:$true] %s732
          %735 = dma.vmem_to_hbm [thread:$0]  %s733, 16, %s730, %s720
        $region76: #{tpu_custom_call.1} parent=55 // pred_fallthru
          _
      $region56: #{tpu_custom_call.1} parent=5 // pred_fallthru
        _
      %p736 = scmp.le.s32.totalorder 2, %s25
      // Predicated region
      $region77: #{tpu_custom_call.1} parent=5 // pred_check
        %p737 = pneg %p736
      $region78: #{tpu_custom_call.1} parent=5 // pred_check_branch
        %739 = sbr.rel (%p737) target = $region80
      $region79: #{tpu_custom_call.1} parent=5 // pred_region
        %s740 = ssub.s32 %s25, 2
        // Predicated region
        $region81: #{tpu_custom_call.1} parent=79 // pred_check
          %p741 = pneg %p248
        $region82: #{tpu_custom_call.1} parent=79 // pred_check_branch
          %743 = sbr.rel (%p741) target = $region84
        $region83: #{tpu_custom_call.1} parent=79 // pred_region
          %s744 = sand.u32 %s233, 1
          %s745 = scalar_lea.sflag [#allocation5], %s744
          %s746 = sand.u32 %s233, 1
          %s747 = scalar_lea.vmem [#allocation11], %s746
          %748 = dma.done %s745, 16
        $region84: #{tpu_custom_call.1} parent=79 // pred_fallthru
          _
      $region80: #{tpu_custom_call.1} parent=5 // pred_fallthru
        _
    $region6: #{tpu_custom_call.1} parent=1 // loop_footer
      %s29 = sadd.s32 1, %s25
    $region7: #{tpu_custom_call.1} parent=1 // loop_footer_branch
      %24 = sbr.rel target = $region3
    $region8: #{tpu_custom_call.1} parent=1 // loop_exit
      _
    %749 = vsyncpa [#allocation4], 1
    %s750 = scalar_lea.sflag [#allocation4], 1
    %751 = vsyncpa %s750, 1
    %752 = vsyncpa [#allocation7], 1
    %753 = vsyncpa [#allocation10], 1
    %754 = vsyncpa [#allocation5], 1
    %s755 = scalar_lea.sflag [#allocation5], 1
    %756 = vsyncpa %s755, 1

</llo_original>
